<compile_context>
chip_gen: v7x
topology: tpu7x:2x2x1
jax: 0.10.0
libtpu: 0.0.40
codegen_flags: <defaults>
</compile_context>

<pallas_src>
import functools

import numpy as np
import jax
import jax.numpy as jnp
from jax.experimental import pallas as pl
from jax.experimental.pallas import tpu as pltpu


# -----------------------------------------------------------------------------
# Helpers
# -----------------------------------------------------------------------------
def _round_up(x, m):
    return ((x + m - 1) // m) * m


def _pick_tile_b(batch):
    """Batch tile: full (8-aligned) batch when small, 512 rows when large."""
    if batch >= 512:
        return 512
    return _round_up(max(batch, 1), 8)


# -----------------------------------------------------------------------------
# Fused MLP-stack kernel: whole layer stack in one kernel, activations stay on-chip
# -----------------------------------------------------------------------------
def _fused_mlp_kernel(x_ref, w_ref, b_ref, o_ref, *, num_layers, negative_slope,
                      final_sigmoid):
    """x_ref: (TB, D), w_ref: (L, D, D), b_ref: (L, 1, D), o_ref: (TB, D)."""
    h = x_ref[...]                                  # f32 activations stay in vregs/VMEM
    for l in range(num_layers):                     # static unroll (few, small layers)
        if l > 0:
            if negative_slope == 0.0:
                h = jnp.maximum(h, 0.0)                               # ReLU (final MLP head)
            else:
                h = jnp.where(h >= 0.0, h, negative_slope * h)        # LeakyReLU(0.1)
        h = jnp.dot(h, w_ref[l], preferred_element_type=jnp.float32) + b_ref[l]
    if final_sigmoid:
        h = 1.0 / (1.0 + jnp.exp(-h))               # sigmoid on the EUP
    o_ref[...] = h.astype(o_ref.dtype)


def fused_mlp_pallas(x_pad, w_stack, b_stack, *, negative_slope, final_sigmoid, tile_b):
    """x_pad: (B_pad, D) f32, w_stack: (L, D, D), b_stack: (L, 1, D) -> (B_pad, D)."""
    B_pad, D = x_pad.shape
    L = w_stack.shape[0]
    assert B_pad % tile_b == 0 and D % 128 == 0

    # Rough resident-VMEM estimate (weights + biases + double-buffered in/out tiles).
    est_bytes = 4 * (L * D * D + L * D) + 4 * 4 * tile_b * D
    vmem_limit = None
    if est_bytes > (24 << 20):
        # Budget against the smallest physical VMEM across generations (v7x: 64 MiB/TC).
        vmem_limit = min(_round_up(2 * est_bytes, 1 << 20), 64 << 20)

    kernel = functools.partial(
        _fused_mlp_kernel, num_layers=L, negative_slope=negative_slope,
        final_sigmoid=final_sigmoid)
    return pl.pallas_call(
        kernel,
        out_shape=jax.ShapeDtypeStruct((B_pad, D), x_pad.dtype),
        grid=(B_pad // tile_b,),
        in_specs=[
            pl.BlockSpec((tile_b, D), lambda i: (i, 0)),   # batch-tiled activations
            pl.BlockSpec((L, D, D), lambda i: (0, 0, 0)),  # weights: VMEM-resident
            pl.BlockSpec((L, 1, D), lambda i: (0, 0, 0)),  # biases:  VMEM-resident
        ],
        out_specs=pl.BlockSpec((tile_b, D), lambda i: (i, 0)),
        compiler_params=pltpu.CompilerParams(
            dimension_semantics=("parallel",),             # shard batch tiles across TCs (v7x)
            vmem_limit_bytes=vmem_limit,
        ),
    )(x_pad, w_stack, b_stack)


def mlp_stack_apply(x, w_stack, b_stack, d_in, d_out, *, negative_slope, final_sigmoid):
    """x: (B, d_in) -> (B, d_out) through the padded/stacked layer weights."""
    B = x.shape[0]
    L, D, _ = w_stack.shape
    tile_b = _pick_tile_b(B)
    B_pad = _round_up(B, tile_b)
    x_pad = jnp.zeros((B_pad, D), jnp.float32).at[:B, :d_in].set(x.astype(jnp.float32))
    out_pad = fused_mlp_pallas(x_pad, w_stack, b_stack, negative_slope=negative_slope,
                               final_sigmoid=final_sigmoid, tile_b=tile_b)
    return out_pad[:B, :d_out]


# -----------------------------------------------------------------------------
# PyTorch-Linear-compatible init
# -----------------------------------------------------------------------------
def _linear_init(key, d_in, d_out):
    kw, kb = jax.random.split(key)
    bound = 1.0 / float(np.sqrt(d_in))
    w_t = jax.random.uniform(kw, (d_in, d_out), jnp.float32, minval=-bound, maxval=bound)
    b = jax.random.uniform(kb, (d_out,), jnp.float32, minval=-bound, maxval=bound)
    return w_t, b


def init_mlp_noactivation(key, input_dim, mlp_pattern, num_classes):
    dims = [input_dim] + list(mlp_pattern) + [num_classes]
    params = []
    for i in range(len(dims) - 1):
        key, k = jax.random.split(key)
        params.append(_linear_init(k, dims[i], dims[i + 1]))
    return params


def init_mlp(key, input_dim, hidden_dim, num_layers, num_classes):
    params = []
    for i in range(num_layers):
        d1 = input_dim if i == 0 else hidden_dim
        d2 = hidden_dim if i < num_layers - 1 else num_classes
        key, k = jax.random.split(key)
        params.append(_linear_init(k, d1, d2))
    return params


# -----------------------------------------------------------------------------
# Parameter stacking (zero-padded to a lane-aligned common width D)
# -----------------------------------------------------------------------------
def stack_mlp_params(params):
    """Stack one MLP's layers into (L, D, D) / (L, 1, D), D = 128-aligned max width."""
    dims = [params[0][0].shape[0]] + [w.shape[1] for w, _ in params]
    D = _round_up(max(dims), 128)
    L = len(params)
    w_stack = np.zeros((L, D, D), np.float32)
    b_stack = np.zeros((L, 1, D), np.float32)
    for l, (w, b) in enumerate(params):
        d1, d2 = w.shape
        w_stack[l, :d1, :d2] = np.asarray(w)
        b_stack[l, 0, :d2] = np.asarray(b)
    return jnp.asarray(w_stack), jnp.asarray(b_stack), dims[0], dims[-1]


def stack_multihead_params(head_params):
    """Fuse M independent MLP_noactivation heads (shared input) into ONE layer stack.

    Layer 0: head weights concatenated along output features (input is shared).
    Layers >0: block-diagonal weights (head m's block on the diagonal).  Off-diagonal zeros
    contribute exactly 0, so this reproduces the per-head computation bit-for-bit up to f32
    summation order, and the concatenated last-layer outputs are exactly custom_model's cat().
    """
    M = len(head_params)
    L = len(head_params[0])
    in_dim = head_params[0][0][0].shape[0]
    out_dims = [head_params[0][l][0].shape[1] for l in range(L)]
    dims = [in_dim] + [M * d for d in out_dims]
    D = _round_up(max(dims), 128)
    w_stack = np.zeros((L, D, D), np.float32)
    b_stack = np.zeros((L, 1, D), np.float32)
    for l in range(L):
        d1 = in_dim if l == 0 else out_dims[l - 1]
        d2 = out_dims[l]
        for m, params in enumerate(head_params):
            w, b = params[l]
            r0 = 0 if l == 0 else m * d1
            c0 = m * d2
            w_stack[l, r0:r0 + d1, c0:c0 + d2] = np.asarray(w)
            b_stack[l, 0, c0:c0 + d2] = np.asarray(b)
    return jnp.asarray(w_stack), jnp.asarray(b_stack), in_dim, M * out_dims[-1]


# -----------------------------------------------------------------------------
# Module-level forwards built on the fused kernel
# -----------------------------------------------------------------------------
def transition_scores_forward(data, tw_stack, tb_stack, in_dim, out_dim):
    """custom_model(data, list_static_models): (B, input_dim, n) -> (B, n, diag_data_size)."""
    B, Din, n = data.shape
    x = jnp.transpose(data, (0, 2, 1)).reshape(B * n, Din)
    out = mlp_stack_apply(x, tw_stack, tb_stack, in_dim, out_dim,
                          negative_slope=0.1, final_sigmoid=False)
    return out.reshape(B, n, out_dim)


def mlp_head_forward(s_doc, hw_stack, hb_stack, in_dim, num_classes):
    """SoPa_MLP's final MLP: Linear -> [ReLU -> Linear]* -> sigmoid."""
    return mlp_stack_apply(s_doc, hw_stack, hb_stack, in_dim, num_classes,
                           negative_slope=0.0, final_sigmoid=True)


# -----------------------------------------------------------------------------
# Pure-JAX references
# -----------------------------------------------------------------------------
def mlp_noactivation_ref(x, params, negative_slope=0.1):
    hi = jax.lax.Precision.HIGHEST
    res = jnp.dot(x, params[0][0], precision=hi) + params[0][1]
    for w, b in params[1:]:
        act = jnp.where(res >= 0.0, res, negative_slope * res)
        res = jnp.dot(act, w, precision=hi) + b
    return res


def custom_model_ref(data, all_head_params):
    x = jnp.transpose(data, (0, 2, 1))            # (B, n, input_dim)
    outs = [mlp_noactivation_ref(x, p) for p in all_head_params]
    return jnp.concatenate(outs, axis=2)          # (B, n, M)


def mlp_head_ref(x, params):
    hi = jax.lax.Precision.HIGHEST
    res = jnp.dot(x, params[0][0], precision=hi) + params[0][1]
    for w, b in params[1:]:
        res = jnp.dot(jnp.maximum(res, 0.0), w, precision=hi) + b
    return jax.nn.sigmoid(res)


# -----------------------------------------------------------------------------
# Main
# -----------------------------------------------------------------------------
if __name__ == "__main__":
    # Small shapes consistent with SoPa_MLP: input is (batch, input_dim, seq_len).
    B, input_dim, n = 2, 16, 8
    pattern_specs = {3: 2}                    # {pattern_len: num_patterns}
    num_diags = 2
    total_num_patterns = sum(pattern_specs.values())               # 2
    max_pattern_length = max(pattern_specs.keys())                 # 3
    diag_data_size = total_num_patterns * num_diags * max_pattern_length  # 12 heads
    mlp_pattern_NN = [16]                     # MLP_noactivation hidden widths
    mlp_hidden_dim, num_mlp_layers, num_classes = 32, 2, 2

    key = jax.random.PRNGKey(0)
    key, kd, ks = jax.random.split(key, 3)
    data = jax.random.normal(kd, (B, input_dim, n), jnp.float32)

    # One MLP_noactivation(input_dim, mlp_pattern_NN, 1) per diagonal entry.
    head_params = []
    for _ in range(diag_data_size):
        key, k = jax.random.split(key)
        head_params.append(init_mlp_noactivation(k, input_dim, mlp_pattern_NN, 1))
    tw_stack, tb_stack, t_in, t_out = stack_multihead_params(head_params)

    # Final MLP(total_num_patterns, mlp_hidden_dim, num_mlp_layers, num_classes).
    key, k = jax.random.split(key)
    mlp_params = init_mlp(k, total_num_patterns, mlp_hidden_dim, num_mlp_layers, num_classes)
    hw_stack, hb_stack, h_in, h_out = stack_mlp_params(mlp_params)

    # Kernel 1: custom_model — all diag_data_size MLP_noactivation heads, one fused pallas_call.
    trans = jax.block_until_ready(
        transition_scores_forward(data, tw_stack, tb_stack, t_in, t_out))
    trans_ref = custom_model_ref(data, head_params)
    assert trans.shape == (B, n, diag_data_size)
    assert jnp.allclose(trans, trans_ref, atol=1e-4, rtol=1e-4)

    # TODO(synk): semiring recurrence between the two kernels (transition_once loop, end-state
    #             gather, score accumulation) is not ported — `semiring` is undefined in the spec.
    # Kernel 2: final MLP head (ReLU stack + sigmoid) on a document-score matrix of the shape the
    # recurrence would produce: (B, total_num_patterns).
    s_doc = jax.random.normal(ks, (B, total_num_patterns), jnp.float32)
    out = jax.block_until_ready(
        mlp_head_forward(s_doc, hw_stack, hb_stack, h_in, h_out))
    out_ref = mlp_head_ref(s_doc, mlp_params)
    assert out.shape == (B, num_classes)
    assert jnp.allclose(out, out_ref, atol=1e-5, rtol=1e-5)

    print("KERNEL_OK")
</pallas_src>

<mosaic_0001>
module attributes {stable_mosaic.version = 11 : i64} {
  func.func @_fused_mlp_kernel(%arg0: i32, %arg1: memref<16x256xf32, #tpu.memory_space<vmem>>, %arg2: memref<2x256x256xf32, #tpu.memory_space<vmem>>, %arg3: memref<2x1x256xf32, #tpu.memory_space<vmem>>, %arg4: memref<16x256xf32, #tpu.memory_space<vmem>>) attributes {dimension_semantics = [#tpu.dimension_semantics<parallel>], iteration_bounds = array<i64: 1>, scalar_prefetch = 0 : i64, scratch_operands = 0 : i64, tpu.core_type = #tpu.core_type<tc>, window_params = [{transform_indices = @transform_0, window_bounds = array<i64: 16, 256>}, {pipeline_mode = #tpu.pipeline_mode<synchronous>, transform_indices = @transform_1, window_bounds = array<i64: 2, 256, 256>}, {pipeline_mode = #tpu.pipeline_mode<synchronous>, transform_indices = @transform_2, window_bounds = array<i64: 2, 1, 256>}, {transform_indices = @transform_3, window_bounds = array<i64: 16, 256>}]} {
    %c0 = arith.constant 0 : index
    %c0_0 = arith.constant 0 : index
    %0 = vector.load %arg1[%c0, %c0_0] : memref<16x256xf32, #tpu.memory_space<vmem>>, vector<16x256xf32>
    %c0_1 = arith.constant 0 : index
    %c0_2 = arith.constant 0 : index
    %c0_3 = arith.constant 0 : index
    %1 = vector.load %arg2[%c0_1, %c0_2, %c0_3] : memref<2x256x256xf32, #tpu.memory_space<vmem>>, vector<1x256x256xf32>
    %2 = vector.shape_cast %1 : vector<1x256x256xf32> to vector<256x256xf32>
    %cst = arith.constant dense<0.000000e+00> : vector<16x256xf32>
    %3 = tpu.matmul %0, %2, %cst {dimension_numbers = #tpu.dot_dimension_numbers<[1], [0], [0], [1], [0, 0, 1, 1], [], []>} : vector<16x256xf32>, vector<256x256xf32>, vector<16x256xf32> -> vector<16x256xf32>
    %c0_4 = arith.constant 0 : index
    %c0_5 = arith.constant 0 : index
    %c0_6 = arith.constant 0 : index
    %4 = vector.load %arg3[%c0_4, %c0_5, %c0_6] : memref<2x1x256xf32, #tpu.memory_space<vmem>>, vector<1x1x256xf32>
    %5 = vector.shape_cast %4 : vector<1x1x256xf32> to vector<1x256xf32>
    %6 = vector.broadcast %5 : vector<1x256xf32> to vector<16x256xf32>
    %7 = arith.addf %3, %6 : vector<16x256xf32>
    %cst_7 = arith.constant 0.000000e+00 : f32
    %8 = vector.broadcast %cst_7 : f32 to vector<16x256xf32>
    %9 = arith.cmpf oge, %7, %8 : vector<16x256xf32>
    %cst_8 = arith.constant 1.000000e-01 : f32
    %10 = vector.broadcast %cst_8 : f32 to vector<16x256xf32>
    %11 = arith.mulf %10, %7 : vector<16x256xf32>
    %12 = arith.select %9, %7, %11 : vector<16x256xi1>, vector<16x256xf32>
    %c1 = arith.constant 1 : index
    %c0_9 = arith.constant 0 : index
    %c0_10 = arith.constant 0 : index
    %13 = vector.load %arg2[%c1, %c0_9, %c0_10] : memref<2x256x256xf32, #tpu.memory_space<vmem>>, vector<1x256x256xf32>
    %14 = vector.shape_cast %13 : vector<1x256x256xf32> to vector<256x256xf32>
    %cst_11 = arith.constant dense<0.000000e+00> : vector<16x256xf32>
    %15 = tpu.matmul %12, %14, %cst_11 {dimension_numbers = #tpu.dot_dimension_numbers<[1], [0], [0], [1], [0, 0, 1, 1], [], []>} : vector<16x256xf32>, vector<256x256xf32>, vector<16x256xf32> -> vector<16x256xf32>
    %c1_12 = arith.constant 1 : index
    %c0_13 = arith.constant 0 : index
    %c0_14 = arith.constant 0 : index
    %16 = vector.load %arg3[%c1_12, %c0_13, %c0_14] : memref<2x1x256xf32, #tpu.memory_space<vmem>>, vector<1x1x256xf32>
    %17 = vector.shape_cast %16 : vector<1x1x256xf32> to vector<1x256xf32>
    %18 = vector.broadcast %17 : vector<1x256xf32> to vector<16x256xf32>
    %19 = arith.addf %15, %18 : vector<16x256xf32>
    %c0_15 = arith.constant 0 : index
    %c0_16 = arith.constant 0 : index
    %20 = vector.load %arg4[%c0_15, %c0_16] : memref<16x256xf32, #tpu.memory_space<vmem>>, vector<16x256xf32>
    tpu.vector_store %arg4[%c0_15, %c0_16], %19 {strides = array<i32>} : memref<16x256xf32, #tpu.memory_space<vmem>>, vector<16x256xf32>,
    return
  }
  func.func @transform_0(%arg0: i32) -> (i32, i32) {
    %c0_i32 = arith.constant 0 : i32
    %c0_i32_0 = arith.constant 0 : i32
    return %arg0, %c0_i32 : i32, i32
  }
  func.func @transform_1(%arg0: i32) -> (i32, i32, i32) {
    %c0_i32 = arith.constant 0 : i32
    %c0_i32_0 = arith.constant 0 : i32
    %c0_i32_1 = arith.constant 0 : i32
    %c0_i32_2 = arith.constant 0 : i32
    return %c0_i32, %c0_i32_0, %c0_i32_1 : i32, i32, i32
  }
  func.func @transform_2(%arg0: i32) -> (i32, i32, i32) {
    %c0_i32 = arith.constant 0 : i32
    %c0_i32_0 = arith.constant 0 : i32
    %c0_i32_1 = arith.constant 0 : i32
    %c0_i32_2 = arith.constant 0 : i32
    return %c0_i32, %c0_i32_0, %c0_i32_1 : i32, i32, i32
  }
  func.func @transform_3(%arg0: i32) -> (i32, i32) {
    %c0_i32 = arith.constant 0 : i32
    %c0_i32_0 = arith.constant 0 : i32
    return %arg0, %c0_i32 : i32, i32
  }
}

</mosaic_0001>

<llo_original>
// kernel: tpu_custom_call.1
$region0: #{tpu_custom_call.1}
  #allocation0 [shape = 'u32[]', space=smem, size = 0x4, offset = 0x4, fixed_abs, tag = 'smem constant byte address 0x4 - core index']
  #allocation1 [shape = 'u32[144,128]{1,0:T(1,128)}', space=vmem, size = 0x12000, scoped, tag = 'internal scratch']
  %s0 = inlined_call_operand.hbm [shape: f32[16,256], index: 0, kind: input, shape index: {}]
  %s1 = inlined_call_operand.hbm [shape: f32[2,256,256], index: 1, kind: input, shape index: {}]
  %s2 = inlined_call_operand.vmem [shape: f32[2,1,256], index: 2, kind: input, shape index: {}]
  %s3 = inlined_call_operand.hbm [shape: f32[16,256], index: 3, kind: output, shape index: {}]
  %s4 = sld [smem:[#allocation0]]
  $region30: #{tpu_custom_call.1} parent=0
    _
  %s6 = ssub.s32 1, %s4
  %s7 = scalar_select 0, %s6, %s4
  $region1: #{tpu_custom_call.1} parent=0
    #allocation2 [shape = 'u8[16384]{0}', space=vmem, size = 0x4000, scoped, tag = 'input window, operand 0, single buffered']
    #allocation3 [shape = 's32[1]{0}', space=sflag, size = 0x4, scoped, tag = 'scoped memory for tpu_custom_call.1']
    #allocation4 [shape = 's32[1]{0}', space=sflag, size = 0x4, scoped, tag = 'scoped memory for tpu_custom_call.1']
    #allocation5 [shape = 'u8[524288]{0}', space=vmem, size = 0x80000, scoped, tag = 'input window, operand 1, single buffered']
    #allocation6 [shape = 's32[1]{0}', space=sflag, size = 0x4, scoped, tag = 'scoped memory for tpu_custom_call.1']
    #allocation7 [shape = 'u8[16384]{0}', space=vmem, size = 0x4000, scoped, tag = 'output window, operand 0, single buffered']
    %8 = vsyncpa [#allocation3], 0
    %9 = vsyncpa [#allocation6], 0
    %10 = vsyncpa [#allocation4], 0
    // Predicated region
    $region2: #{tpu_custom_call.1} parent=1 // pred_check
      _
    $region3: #{tpu_custom_call.1} parent=1 // pred_check_branch
      %12 = sbr.rel (0) target = $region5
    $region4: #{tpu_custom_call.1} parent=1 // pred_region
      %s14 = ssub.s32 512, 512
      %15 = vsyncadd [#allocation3], %s14
      %s16 = sshll.u32 [#allocation2], 4
      %s17 = int_to_ptr.vmem [resolvable:$true] %s16
      %22 = dma.hbm_to_vmem [thread:$0]  %s0, 512, %s17, [#allocation3], 256, 256, 16
    $region5: #{tpu_custom_call.1} parent=1 // pred_fallthru
      _
    // Predicated region
    $region6: #{tpu_custom_call.1} parent=1 // pred_check
      _
    $region7: #{tpu_custom_call.1} parent=1 // pred_check_branch
      %24 = sbr.rel (0) target = $region9
    $region8: #{tpu_custom_call.1} parent=1 // pred_region
      %s26 = ssub.s32 16384, 16384
      %27 = vsyncadd [#allocation6], %s26
      %s28 = sshll.u32 [#allocation5], 4
      %s29 = int_to_ptr.vmem [resolvable:$true] %s28
      %34 = dma.hbm_to_vmem [thread:$0]  %s1, 16384, %s29, [#allocation6], 256, 256, 16
    $region9: #{tpu_custom_call.1} parent=1 // pred_fallthru
      _
    // Predicated region
    $region10: #{tpu_custom_call.1} parent=1 // pred_check
      _
    $region11: #{tpu_custom_call.1} parent=1 // pred_check_branch
      %36 = sbr.rel (0) target = $region13
    $region12: #{tpu_custom_call.1} parent=1 // pred_region
      _
    $region13: #{tpu_custom_call.1} parent=1 // pred_fallthru
      _
    // Predicated region
    $region14: #{tpu_custom_call.1} parent=1 // pred_check
      _
    $region15: #{tpu_custom_call.1} parent=1 // pred_check_branch
      %38 = sbr.rel (0) target = $region17
    $region16: #{tpu_custom_call.1} parent=1 // pred_region
      %39 = dma.done [#allocation3], 512
    $region17: #{tpu_custom_call.1} parent=1 // pred_fallthru
      _
    // Predicated region
    $region18: #{tpu_custom_call.1} parent=1 // pred_check
      _
    $region19: #{tpu_custom_call.1} parent=1 // pred_check_branch
      %41 = sbr.rel (0) target = $region21
    $region20: #{tpu_custom_call.1} parent=1 // pred_region
      %42 = dma.done [#allocation6], 16384
    $region21: #{tpu_custom_call.1} parent=1 // pred_fallthru
      _
    %v43 = vld [vmem:[#allocation2] sm:$0xff]
    %v44 = vld [vmem:[#allocation2 + $0x8] sm:$0xff]
    %v45 = vld [vmem:[#allocation2 + $0x10] sm:$0xff]
    %v46 = vld [vmem:[#allocation2 + $0x18] sm:$0xff]
    %v47 = vld [vmem:[#allocation5] sm:$0xff]
    %v48 = vld [vmem:[#allocation5 + $0x8] sm:$0xff]
    %v49 = vld [vmem:[#allocation5 + $0x10] sm:$0xff]
    %v50 = vld [vmem:[#allocation5 + $0x18] sm:$0xff]
    %v51 = vld [vmem:[#allocation5 + $0x20] sm:$0xff]
    %v52 = vld [vmem:[#allocation5 + $0x28] sm:$0xff]
    %v53 = vld [vmem:[#allocation5 + $0x30] sm:$0xff]
    %v54 = vld [vmem:[#allocation5 + $0x38] sm:$0xff]
    %v55 = vld [vmem:[#allocation5 + $0x40] sm:$0xff]
    %v56 = vld [vmem:[#allocation5 + $0x48] sm:$0xff]
    %v57 = vld [vmem:[#allocation5 + $0x50] sm:$0xff]
    %v58 = vld [vmem:[#allocation5 + $0x58] sm:$0xff]
    %v59 = vld [vmem:[#allocation5 + $0x60] sm:$0xff]
    %v60 = vld [vmem:[#allocation5 + $0x68] sm:$0xff]
    %v61 = vld [vmem:[#allocation5 + $0x70] sm:$0xff]
    %v62 = vld [vmem:[#allocation5 + $0x78] sm:$0xff]
    %v63 = vld [vmem:[#allocation5 + $0x80] sm:$0xff]
    %v64 = vld [vmem:[#allocation5 + $0x88] sm:$0xff]
    %v65 = vld [vmem:[#allocation5 + $0x90] sm:$0xff]
    %v66 = vld [vmem:[#allocation5 + $0x98] sm:$0xff]
    %v67 = vld [vmem:[#allocation5 + $0xa0] sm:$0xff]
    %v68 = vld [vmem:[#allocation5 + $0xa8] sm:$0xff]
    %v69 = vld [vmem:[#allocation5 + $0xb0] sm:$0xff]
    %v70 = vld [vmem:[#allocation5 + $0xb8] sm:$0xff]
    %v71 = vld [vmem:[#allocation5 + $0xc0] sm:$0xff]
    %v72 = vld [vmem:[#allocation5 + $0xc8] sm:$0xff]
    %v73 = vld [vmem:[#allocation5 + $0xd0] sm:$0xff]
    %v74 = vld [vmem:[#allocation5 + $0xd8] sm:$0xff]
    %v75 = vld [vmem:[#allocation5 + $0xe0] sm:$0xff]
    %v76 = vld [vmem:[#allocation5 + $0xe8] sm:$0xff]
    %v77 = vld [vmem:[#allocation5 + $0xf0] sm:$0xff]
    %v78 = vld [vmem:[#allocation5 + $0xf8] sm:$0xff]
    %v79 = vld [vmem:[#allocation5 + $0x100] sm:$0xff]
    %v80 = vld [vmem:[#allocation5 + $0x108] sm:$0xff]
    %v81 = vld [vmem:[#allocation5 + $0x110] sm:$0xff]
    %v82 = vld [vmem:[#allocation5 + $0x118] sm:$0xff]
    %v83 = vld [vmem:[#allocation5 + $0x120] sm:$0xff]
    %v84 = vld [vmem:[#allocation5 + $0x128] sm:$0xff]
    %v85 = vld [vmem:[#allocation5 + $0x130] sm:$0xff]
    %v86 = vld [vmem:[#allocation5 + $0x138] sm:$0xff]
    %v87 = vld [vmem:[#allocation5 + $0x140] sm:$0xff]
    %v88 = vld [vmem:[#allocation5 + $0x148] sm:$0xff]
    %v89 = vld [vmem:[#allocation5 + $0x150] sm:$0xff]
    %v90 = vld [vmem:[#allocation5 + $0x158] sm:$0xff]
    %v91 = vld [vmem:[#allocation5 + $0x160] sm:$0xff]
    %v92 = vld [vmem:[#allocation5 + $0x168] sm:$0xff]
    %v93 = vld [vmem:[#allocation5 + $0x170] sm:$0xff]
    %v94 = vld [vmem:[#allocation5 + $0x178] sm:$0xff]
    %v95 = vld [vmem:[#allocation5 + $0x180] sm:$0xff]
    %v96 = vld [vmem:[#allocation5 + $0x188] sm:$0xff]
    %v97 = vld [vmem:[#allocation5 + $0x190] sm:$0xff]
    %v98 = vld [vmem:[#allocation5 + $0x198] sm:$0xff]
    %v99 = vld [vmem:[#allocation5 + $0x1a0] sm:$0xff]
    %v100 = vld [vmem:[#allocation5 + $0x1a8] sm:$0xff]
    %v101 = vld [vmem:[#allocation5 + $0x1b0] sm:$0xff]
    %v102 = vld [vmem:[#allocation5 + $0x1b8] sm:$0xff]
    %v103 = vld [vmem:[#allocation5 + $0x1c0] sm:$0xff]
    %v104 = vld [vmem:[#allocation5 + $0x1c8] sm:$0xff]
    %v105 = vld [vmem:[#allocation5 + $0x1d0] sm:$0xff]
    %v106 = vld [vmem:[#allocation5 + $0x1d8] sm:$0xff]
    %v107 = vld [vmem:[#allocation5 + $0x1e0] sm:$0xff]
    %v108 = vld [vmem:[#allocation5 + $0x1e8] sm:$0xff]
    %v109 = vld [vmem:[#allocation5 + $0x1f0] sm:$0xff]
    %v110 = vld [vmem:[#allocation5 + $0x1f8] sm:$0xff]
    %v111 = vld [vmem:[%s2] sm:$0x3]
    %v113 = vlaneseq
    %v114 = vshrl.u32 %v113, 7
    %v115 = vsub.s32 0, %v114
    %v116 = vrot.slane %v111, %v115
    %v117 = vlaneseq
    %v118 = vshrl.u32 %v117, 7
    %v119 = vsub.s32 1, %v118
    %v120 = vrot.slane %v111, %v119
    %123 = vmatprep.subr.mxu0 %v48
    %124 = vmatpush1.msra.mxu0 %v47
    %125 = vmatprep.subr.mxu0 %v50
    %126 = vmatpush1.msra.mxu0 %v49
    %127 = vmatprep.subr.mxu0 %v52
    %128 = vmatpush1.msra.mxu0 %v51
    %129 = vmatprep.subr.mxu0 %v54
    %130 = vmatpush1.msra.mxu0 %v53
    %131 = vmatprep.subr.mxu0 %v56
    %132 = vmatpush1.msra.mxu0 %v55
    %133 = vmatprep.subr.mxu0 %v58
    %134 = vmatpush1.msra.mxu0 %v57
    %135 = vmatprep.subr.mxu0 %v60
    %136 = vmatpush1.msra.mxu0 %v59
    %137 = vmatprep.subr.mxu0 %v62
    %138 = vmatpush1.msra.mxu0 %v61
    %139 = vmatprep.subr.mxu0 %v64
    %140 = vmatpush1.msra.mxu0 %v63
    %141 = vmatprep.subr.mxu0 %v66
    %142 = vmatpush1.msra.mxu0 %v65
    %143 = vmatprep.subr.mxu0 %v68
    %144 = vmatpush1.msra.mxu0 %v67
    %145 = vmatprep.subr.mxu0 %v70
    %146 = vmatpush1.msra.mxu0 %v69
    %147 = vmatprep.subr.mxu0 %v72
    %148 = vmatpush1.msra.mxu0 %v71
    %149 = vmatprep.subr.mxu0 %v74
    %150 = vmatpush1.msra.mxu0 %v73
    %151 = vmatprep.subr.mxu0 %v76
    %152 = vmatpush1.msra.mxu0 %v75
    %153 = vmatprep.subr.mxu0 %v78
    %154 = vmatpush1.msra.mxu0 %v77
    %155 = vmatprep.subr.mxu0 %v80
    %156 = vmatpush1.msra.mxu0 %v79
    %157 = vmatprep.subr.mxu0 %v82
    %158 = vmatpush1.msra.mxu0 %v81
    %159 = vmatprep.subr.mxu0 %v84
    %160 = vmatpush1.msra.mxu0 %v83
    %161 = vmatprep.subr.mxu0 %v86
    %162 = vmatpush1.msra.mxu0 %v85
    %163 = vmatprep.subr.mxu0 %v88
    %164 = vmatpush1.msra.mxu0 %v87
    %165 = vmatprep.subr.mxu0 %v90
    %166 = vmatpush1.msra.mxu0 %v89
    %167 = vmatprep.subr.mxu0 %v92
    %168 = vmatpush1.msra.mxu0 %v91
    %169 = vmatprep.subr.mxu0 %v94
    %170 = vmatpush1.msra.mxu0 %v93
    %171 = vmatprep.subr.mxu0 %v96
    %172 = vmatpush1.msra.mxu0 %v95
    %173 = vmatprep.subr.mxu0 %v98
    %174 = vmatpush1.msra.mxu0 %v97
    %175 = vmatprep.subr.mxu0 %v100
    %176 = vmatpush1.msra.mxu0 %v99
    %177 = vmatprep.subr.mxu0 %v102
    %178 = vmatpush1.msra.mxu0 %v101
    %179 = vmatprep.subr.mxu0 %v104
    %180 = vmatpush1.msra.mxu0 %v103
    %181 = vmatprep.subr.mxu0 %v106
    %182 = vmatpush1.msra.mxu0 %v105
    %183 = vmatprep.subr.mxu0 %v108
    %184 = vmatpush1.msra.mxu0 %v107
    %185 = vmatprep.subr.mxu0 %v110
    %186 = vmatpush1.msra.mxu0 %v109
    %187 = vmatprep.mubr.f32.mxu0 %v44
    %188 = vmatmul.mubr.f32.gmra.mrb[0].mxu0 %v43
    %v189 = vpop.f32.mrb[0].mxu0
    %v190 = vadd.f32 %v116, %v189
    %v191 = vpop.f32.mrb[0].mxu0
    %v192 = vadd.f32 %v120, %v191
    %193 = vmatprep.mubr.f32.mxu0 %v46
    %194 = vmatmul.mubr.f32.gmra.mrb[0].mxu0 %v45
    %v195 = vpop.f32.mrb[0].mxu0
    %v196 = vadd.f32 %v116, %v195
    %v197 = vpop.f32.mrb[0].mxu0
    %v198 = vadd.f32 %v120, %v197
    %199 = vdwg.mxu0
    %vm200 = vcmp.ge.f32.partialorder %v190, 0.0
    %vm201 = vcmp.ge.f32.partialorder %v192, 0.0
    %vm202 = vcmp.ge.f32.partialorder %v196, 0.0
    %vm203 = vcmp.ge.f32.partialorder %v198, 0.0
    %v204 = vmul.f32 %v190, 0.1
    %v205 = vmul.f32 %v192, 0.1
    %v206 = vmul.f32 %v196, 0.1
    %v207 = vmul.f32 %v198, 0.1
    %v208 = vsel %vm200, %v190, %v204
    %v209 = vsel %vm201, %v192, %v205
    %v210 = vsel %vm202, %v196, %v206
    %v211 = vsel %vm203, %v198, %v207
    %s212 = scalar_lea.vmem [#allocation5], 512
    %v213 = vld [vmem:[%s212] sm:$0xff]
    %v214 = vld [vmem:[%s212 + $0x8] sm:$0xff]
    %v215 = vld [vmem:[%s212 + $0x10] sm:$0xff]
    %v216 = vld [vmem:[%s212 + $0x18] sm:$0xff]
    %v217 = vld [vmem:[%s212 + $0x20] sm:$0xff]
    %v218 = vld [vmem:[%s212 + $0x28] sm:$0xff]
    %v219 = vld [vmem:[%s212 + $0x30] sm:$0xff]
    %v220 = vld [vmem:[%s212 + $0x38] sm:$0xff]
    %v221 = vld [vmem:[%s212 + $0x40] sm:$0xff]
    %v222 = vld [vmem:[%s212 + $0x48] sm:$0xff]
    %v223 = vld [vmem:[%s212 + $0x50] sm:$0xff]
    %v224 = vld [vmem:[%s212 + $0x58] sm:$0xff]
    %v225 = vld [vmem:[%s212 + $0x60] sm:$0xff]
    %v226 = vld [vmem:[%s212 + $0x68] sm:$0xff]
    %v227 = vld [vmem:[%s212 + $0x70] sm:$0xff]
    %v228 = vld [vmem:[%s212 + $0x78] sm:$0xff]
    %v229 = vld [vmem:[%s212 + $0x80] sm:$0xff]
    %v230 = vld [vmem:[%s212 + $0x88] sm:$0xff]
    %v231 = vld [vmem:[%s212 + $0x90] sm:$0xff]
    %v232 = vld [vmem:[%s212 + $0x98] sm:$0xff]
    %v233 = vld [vmem:[%s212 + $0xa0] sm:$0xff]
    %v234 = vld [vmem:[%s212 + $0xa8] sm:$0xff]
    %v235 = vld [vmem:[%s212 + $0xb0] sm:$0xff]
    %v236 = vld [vmem:[%s212 + $0xb8] sm:$0xff]
    %v237 = vld [vmem:[%s212 + $0xc0] sm:$0xff]
    %v238 = vld [vmem:[%s212 + $0xc8] sm:$0xff]
    %v239 = vld [vmem:[%s212 + $0xd0] sm:$0xff]
    %v240 = vld [vmem:[%s212 + $0xd8] sm:$0xff]
    %v241 = vld [vmem:[%s212 + $0xe0] sm:$0xff]
    %v242 = vld [vmem:[%s212 + $0xe8] sm:$0xff]
    %v243 = vld [vmem:[%s212 + $0xf0] sm:$0xff]
    %v244 = vld [vmem:[%s212 + $0xf8] sm:$0xff]
    %v245 = vld [vmem:[%s212 + $0x100] sm:$0xff]
    %v246 = vld [vmem:[%s212 + $0x108] sm:$0xff]
    %v247 = vld [vmem:[%s212 + $0x110] sm:$0xff]
    %v248 = vld [vmem:[%s212 + $0x118] sm:$0xff]
    %v249 = vld [vmem:[%s212 + $0x120] sm:$0xff]
    %v250 = vld [vmem:[%s212 + $0x128] sm:$0xff]
    %v251 = vld [vmem:[%s212 + $0x130] sm:$0xff]
    %v252 = vld [vmem:[%s212 + $0x138] sm:$0xff]
    %v253 = vld [vmem:[%s212 + $0x140] sm:$0xff]
    %v254 = vld [vmem:[%s212 + $0x148] sm:$0xff]
    %v255 = vld [vmem:[%s212 + $0x150] sm:$0xff]
    %v256 = vld [vmem:[%s212 + $0x158] sm:$0xff]
    %v257 = vld [vmem:[%s212 + $0x160] sm:$0xff]
    %v258 = vld [vmem:[%s212 + $0x168] sm:$0xff]
    %v259 = vld [vmem:[%s212 + $0x170] sm:$0xff]
    %v260 = vld [vmem:[%s212 + $0x178] sm:$0xff]
    %v261 = vld [vmem:[%s212 + $0x180] sm:$0xff]
    %v262 = vld [vmem:[%s212 + $0x188] sm:$0xff]
    %v263 = vld [vmem:[%s212 + $0x190] sm:$0xff]
    %v264 = vld [vmem:[%s212 + $0x198] sm:$0xff]
    %v265 = vld [vmem:[%s212 + $0x1a0] sm:$0xff]
    %v266 = vld [vmem:[%s212 + $0x1a8] sm:$0xff]
    %v267 = vld [vmem:[%s212 + $0x1b0] sm:$0xff]
    %v268 = vld [vmem:[%s212 + $0x1b8] sm:$0xff]
    %v269 = vld [vmem:[%s212 + $0x1c0] sm:$0xff]
    %v270 = vld [vmem:[%s212 + $0x1c8] sm:$0xff]
    %v271 = vld [vmem:[%s212 + $0x1d0] sm:$0xff]
    %v272 = vld [vmem:[%s212 + $0x1d8] sm:$0xff]
    %v273 = vld [vmem:[%s212 + $0x1e0] sm:$0xff]
    %v274 = vld [vmem:[%s212 + $0x1e8] sm:$0xff]
    %v275 = vld [vmem:[%s212 + $0x1f0] sm:$0xff]
    %v276 = vld [vmem:[%s212 + $0x1f8] sm:$0xff]
    %s277 = scalar_lea.vmem %s2, 2
    %v278 = vld [vmem:[%s277] sm:$0x3]
    %v280 = vlaneseq
    %v281 = vshrl.u32 %v280, 7
    %v282 = vsub.s32 0, %v281
    %v283 = vrot.slane %v278, %v282
    %v284 = vlaneseq
    %v285 = vshrl.u32 %v284, 7
    %v286 = vsub.s32 1, %v285
    %v287 = vrot.slane %v278, %v286
    %290 = vmatprep.subr.mxu0 %v214
    %291 = vmatpush1.msra.mxu0 %v213
    %292 = vmatprep.subr.mxu0 %v216
    %293 = vmatpush1.msra.mxu0 %v215
    %294 = vmatprep.subr.mxu0 %v218
    %295 = vmatpush1.msra.mxu0 %v217
    %296 = vmatprep.subr.mxu0 %v220
    %297 = vmatpush1.msra.mxu0 %v219
    %298 = vmatprep.subr.mxu0 %v222
    %299 = vmatpush1.msra.mxu0 %v221
    %300 = vmatprep.subr.mxu0 %v224
    %301 = vmatpush1.msra.mxu0 %v223
    %302 = vmatprep.subr.mxu0 %v226
    %303 = vmatpush1.msra.mxu0 %v225
    %304 = vmatprep.subr.mxu0 %v228
    %305 = vmatpush1.msra.mxu0 %v227
    %306 = vmatprep.subr.mxu0 %v230
    %307 = vmatpush1.msra.mxu0 %v229
    %308 = vmatprep.subr.mxu0 %v232
    %309 = vmatpush1.msra.mxu0 %v231
    %310 = vmatprep.subr.mxu0 %v234
    %311 = vmatpush1.msra.mxu0 %v233
    %312 = vmatprep.subr.mxu0 %v236
    %313 = vmatpush1.msra.mxu0 %v235
    %314 = vmatprep.subr.mxu0 %v238
    %315 = vmatpush1.msra.mxu0 %v237
    %316 = vmatprep.subr.mxu0 %v240
    %317 = vmatpush1.msra.mxu0 %v239
    %318 = vmatprep.subr.mxu0 %v242
    %319 = vmatpush1.msra.mxu0 %v241
    %320 = vmatprep.subr.mxu0 %v244
    %321 = vmatpush1.msra.mxu0 %v243
    %322 = vmatprep.subr.mxu0 %v246
    %323 = vmatpush1.msra.mxu0 %v245
    %324 = vmatprep.subr.mxu0 %v248
    %325 = vmatpush1.msra.mxu0 %v247
    %326 = vmatprep.subr.mxu0 %v250
    %327 = vmatpush1.msra.mxu0 %v249
    %328 = vmatprep.subr.mxu0 %v252
    %329 = vmatpush1.msra.mxu0 %v251
    %330 = vmatprep.subr.mxu0 %v254
    %331 = vmatpush1.msra.mxu0 %v253
    %332 = vmatprep.subr.mxu0 %v256
    %333 = vmatpush1.msra.mxu0 %v255
    %334 = vmatprep.subr.mxu0 %v258
    %335 = vmatpush1.msra.mxu0 %v257
    %336 = vmatprep.subr.mxu0 %v260
    %337 = vmatpush1.msra.mxu0 %v259
    %338 = vmatprep.subr.mxu0 %v262
    %339 = vmatpush1.msra.mxu0 %v261
    %340 = vmatprep.subr.mxu0 %v264
    %341 = vmatpush1.msra.mxu0 %v263
    %342 = vmatprep.subr.mxu0 %v266
    %343 = vmatpush1.msra.mxu0 %v265
    %344 = vmatprep.subr.mxu0 %v268
    %345 = vmatpush1.msra.mxu0 %v267
    %346 = vmatprep.subr.mxu0 %v270
    %347 = vmatpush1.msra.mxu0 %v269
    %348 = vmatprep.subr.mxu0 %v272
    %349 = vmatpush1.msra.mxu0 %v271
    %350 = vmatprep.subr.mxu0 %v274
    %351 = vmatpush1.msra.mxu0 %v273
    %352 = vmatprep.subr.mxu0 %v276
    %353 = vmatpush1.msra.mxu0 %v275
    %354 = vmatprep.mubr.f32.mxu0 %v209
    %355 = vmatmul.mubr.f32.gmra.mrb[0].mxu0 %v208
    %v356 = vpop.f32.mrb[0].mxu0
    %v357 = vadd.f32 %v283, %v356
    %v358 = vpop.f32.mrb[0].mxu0
    %v359 = vadd.f32 %v287, %v358
    %360 = vmatprep.mubr.f32.mxu0 %v211
    %361 = vmatmul.mubr.f32.gmra.mrb[0].mxu0 %v210
    %v362 = vpop.f32.mrb[0].mxu0
    %v363 = vadd.f32 %v283, %v362
    %v364 = vpop.f32.mrb[0].mxu0
    %v365 = vadd.f32 %v287, %v364
    %366 = vdwg.mxu0
    %367 = vst [vmem:[#allocation7] sm:$0xff] %v357
    %368 = vst [vmem:[#allocation7 + $0x8] sm:$0xff] %v359
    %369 = vst [vmem:[#allocation7 + $0x10] sm:$0xff] %v363
    %370 = vst [vmem:[#allocation7 + $0x18] sm:$0xff] %v365
    // Predicated region
    $region22: #{tpu_custom_call.1} parent=1 // pred_check
      _
    $region23: #{tpu_custom_call.1} parent=1 // pred_check_branch
      %372 = sbr.rel (0) target = $region25
    $region24: #{tpu_custom_call.1} parent=1 // pred_region
      %s374 = ssub.s32 512, 512
      %375 = vsyncadd [#allocation4], %s374
      %s376 = sshll.u32 [#allocation7], 4
      %s377 = int_to_ptr.vmem [resolvable:$true] %s376
      %382 = dma.vmem_to_hbm [thread:$0]  %s377, 512, %s3, [#allocation4], 256, 256, 16
    $region25: #{tpu_custom_call.1} parent=1 // pred_fallthru
      _
    // Predicated region
    $region26: #{tpu_custom_call.1} parent=1 // pred_check
      _
    $region27: #{tpu_custom_call.1} parent=1 // pred_check_branch
      %384 = sbr.rel (0) target = $region29
    $region28: #{tpu_custom_call.1} parent=1 // pred_region
      %385 = dma.done [#allocation4], 512
    $region29: #{tpu_custom_call.1} parent=1 // pred_fallthru
      _
    %386 = vsyncpa [#allocation3], 1
    %387 = vsyncpa [#allocation6], 1
    %388 = vsyncpa [#allocation4], 1

</llo_original>
